<compile_context>
chip_gen: v6e
topology: v6e:2x2x1
jax: 0.10.0
libtpu: 0.0.40
codegen_flags: <defaults>
</compile_context>

<pallas_src>
import jax
import jax.numpy as jnp
import numpy as np
from jax import lax
from jax.experimental import pallas as pl
from jax.experimental.pallas import tpu as pltpu


def _make_lstm_kernel(T, B, B_pad, H):
    """Build the fused LSTM + Linear kernel for static (T, B, B_pad, H)."""

    def kernel(x_ref, wih_ref, whh_ref, b_ref, wlin_ref, blin_ref, out_ref):
        # x_ref:    (T*B_pad, D)  bf16   (row t*B_pad + b == timestep t, batch row b; rows >= B are zero pad)
        # wih_ref:  (D, 4H)       bf16   W_ih^T
        # whh_ref:  (H, 4H)       bf16   W_hh^T
        # b_ref:    (1, 4H)       f32    b_ih + b_hh
        # wlin_ref: (H, O)        bf16   W_lin^T
        # blin_ref: (1, O)        f32
        # out_ref:  (B, O)        f32

        # ---- Hoisted input projection: one MXU matmul for all timesteps. ----
        gates_x = jnp.dot(x_ref[...], wih_ref[...],
                          preferred_element_type=jnp.float32) + b_ref[...]  # (T*B_pad, 4H) f32

        whh = whh_ref[...]  # (H, 4H) bf16, resident for the whole recurrence

        # Loop-invariant lane mask selecting the g-gate lanes [2H, 3H).
        lane = lax.broadcasted_iota(jnp.int32, (B_pad, 4 * H), dimension=1)
        g_mask = (lane >= 2 * H) & (lane < 3 * H)

        h = jnp.zeros((B_pad, H), jnp.float32)
        c = jnp.zeros((B_pad, H), jnp.float32)

        # ---- Recurrence: fully unrolled (T is small & static). ----
        # Every slice start is a static multiple of B_pad (a whole sublane tile).
        for t in range(T):
            gates = gates_x[t * B_pad:(t + 1) * B_pad, :] + jnp.dot(
                h.astype(jnp.bfloat16), whh,
                preferred_element_type=jnp.float32)            # (B_pad, 4H) f32

            # Single full-vreg tanh for all four gates:
            #   sigmoid(x) = 0.5 * tanh(0.5 * x) + 0.5  (i, f, o lanes)
            #   tanh(x)                                  (g lanes)
            z = jnp.where(g_mask, gates, 0.5 * gates)
            th = jnp.tanh(z)
            act = jnp.where(g_mask, th, 0.5 * th + 0.5)

            i_g = act[:, 0 * H:1 * H]
            f_g = act[:, 1 * H:2 * H]
            g_g = act[:, 2 * H:3 * H]
            o_g = act[:, 3 * H:4 * H]

            c = f_g * c + i_g * g_g
            h = o_g * jnp.tanh(c)

        # ---- Fused output head on the last hidden state (pred[-1]). ----
        pred = jnp.dot(h.astype(jnp.bfloat16), wlin_ref[...],
                       preferred_element_type=jnp.float32) + blin_ref[...]  # (B_pad, O)
        # Only the real batch rows are written; padded rows never leave the kernel.
        out_ref[...] = pred[:B, :].astype(out_ref.dtype)

    return kernel


def preprocess_params(params, *, hidden_dim, output_dim):
    """One-time parameter preprocessing (hoisted out of the per-forward path)."""
    w_ih, w_hh, b_ih, b_hh, w_lin, b_lin = params
    H, O = hidden_dim, output_dim
    wih_t = jnp.asarray(w_ih).T.astype(jnp.bfloat16)           # (D, 4H)
    whh_t = jnp.asarray(w_hh).T.astype(jnp.bfloat16)           # (H, 4H)
    b = (jnp.asarray(b_ih) + jnp.asarray(b_hh)).reshape(1, 4 * H).astype(jnp.float32)
    wlin_t = jnp.asarray(w_lin).T.astype(jnp.bfloat16)         # (H, O)
    blin = jnp.asarray(b_lin).reshape(1, O).astype(jnp.float32)
    return (wih_t, whh_t, b, wlin_t, blin)


def lstm_model_forward(x, prepped_params, *, batch_size, input_dim, hidden_dim, output_dim):
    """Equivalent of LSTMModel.forward(x): linear(lstm(x)[-1]).squeeze()."""
    wih_t, whh_t, b, wlin_t, blin = prepped_params

    # x.view(-1, batch_size, input_dim)
    x3 = jnp.asarray(x, jnp.float32).reshape(-1, batch_size, input_dim)
    T, B, D = x3.shape
    H, O = hidden_dim, output_dim

    # Pad batch to a full f32 sublane tile so every timestep slice in the kernel is
    # sublane-aligned (zero rows -> bias-only state in padded rows, never read back).
    B_pad = ((B + 7) // 8) * 8
    x_pad = jnp.zeros((T, B_pad, D), jnp.float32).at[:, :B, :].set(x3)
    x2 = x_pad.reshape(T * B_pad, D).astype(jnp.bfloat16)      # (T*B_pad, D)

    out = pl.pallas_call(
        _make_lstm_kernel(T, B, B_pad, H),
        out_shape=jax.ShapeDtypeStruct((B, O), jnp.float32),
        # Single invocation (no grid): every operand is a whole-array VMEM resident,
        # fetched from HBM exactly once (~30 KB total, fits trivially on v5e/v6e/v7x).
        in_specs=[pl.BlockSpec(memory_space=pltpu.MemorySpace.VMEM)] * 6,
        out_specs=pl.BlockSpec(memory_space=pltpu.MemorySpace.VMEM),
    )(x2, wih_t, whh_t, b, wlin_t, blin)

    return jnp.squeeze(out)  # pred[-1].squeeze()


def _reference_forward(x, params, *, batch_size, input_dim, hidden_dim, output_dim):
    """Pure-JAX f32 reference replicating PyTorch LSTM + Linear semantics."""
    w_ih, w_hh, b_ih, b_hh, w_lin, b_lin = params
    x3 = jnp.asarray(x, jnp.float32).reshape(-1, batch_size, input_dim)
    T, B, D = x3.shape
    H = hidden_dim

    def step(carry, x_t):
        h, c = carry
        gates = x_t @ w_ih.T + b_ih + h @ w_hh.T + b_hh
        i = jax.nn.sigmoid(gates[:, 0 * H:1 * H])
        f = jax.nn.sigmoid(gates[:, 1 * H:2 * H])
        g = jnp.tanh(gates[:, 2 * H:3 * H])
        o = jax.nn.sigmoid(gates[:, 3 * H:4 * H])
        c = f * c + i * g
        h = o * jnp.tanh(c)
        return (h, c), h

    h0 = jnp.zeros((B, H), jnp.float32)
    c0 = jnp.zeros((B, H), jnp.float32)
    (_, _), hs = lax.scan(step, (h0, c0), x3)
    pred = hs @ w_lin.T + b_lin
    return jnp.squeeze(pred[-1])


def _init_params(key, input_dim, hidden_dim, output_dim):
    """Deterministic init mimicking PyTorch's uniform(-1/sqrt(H), 1/sqrt(H))."""
    H, D, O = hidden_dim, input_dim, output_dim
    k = 1.0 / np.sqrt(H)
    keys = jax.random.split(key, 6)
    w_ih = jax.random.uniform(keys[0], (4 * H, D), jnp.float32, -k, k)
    w_hh = jax.random.uniform(keys[1], (4 * H, H), jnp.float32, -k, k)
    b_ih = jax.random.uniform(keys[2], (4 * H,), jnp.float32, -k, k)
    b_hh = jax.random.uniform(keys[3], (4 * H,), jnp.float32, -k, k)
    w_lin = jax.random.uniform(keys[4], (O, H), jnp.float32, -k, k)
    b_lin = jax.random.uniform(keys[5], (O,), jnp.float32, -k, k)
    return (w_ih, w_hh, b_ih, b_hh, w_lin, b_lin)


if __name__ == "__main__":
    # Small, consistent shapes: seq=8, batch=2, input_dim=16, hidden=32, output=8.
    SEQ, BATCH, INPUT_DIM, HIDDEN_DIM, OUTPUT_DIM = 8, 2, 16, 32, 8

    key = jax.random.PRNGKey(0)
    k_x, k_p = jax.random.split(key)
    # Input as the flat tensor the PyTorch forward would .view(): (SEQ*BATCH, INPUT_DIM).
    x = jax.random.normal(k_x, (SEQ * BATCH, INPUT_DIM), jnp.float32)
    params = _init_params(k_p, INPUT_DIM, HIDDEN_DIM, OUTPUT_DIM)

    # One-time (per parameter load) preprocessing, hoisted out of the forward path.
    prepped = preprocess_params(params, hidden_dim=HIDDEN_DIM, output_dim=OUTPUT_DIM)

    out = lstm_model_forward(x, prepped, batch_size=BATCH, input_dim=INPUT_DIM,
                             hidden_dim=HIDDEN_DIM, output_dim=OUTPUT_DIM)
    out = jax.block_until_ready(out)

    ref = _reference_forward(x, params, batch_size=BATCH, input_dim=INPUT_DIM,
                             hidden_dim=HIDDEN_DIM, output_dim=OUTPUT_DIM)
    # Tolerance relaxed because the kernel feeds the MXU bf16 operands
    # (f32 accumulation, f32 state/gate math); reference is pure f32.
    np.testing.assert_allclose(np.asarray(out), np.asarray(ref), rtol=3e-2, atol=3e-2)

    print("KERNEL_OK")
</pallas_src>

<mosaic_0001>
module attributes {stable_mosaic.version = 11 : i64} {
  func.func @kernel(%arg0: memref<64x16xbf16, #tpu.memory_space<vmem>>, %arg1: memref<16x128xbf16, #tpu.memory_space<vmem>>, %arg2: memref<32x128xbf16, #tpu.memory_space<vmem>>, %arg3: memref<1x128xf32, #tpu.memory_space<vmem>>, %arg4: memref<32x8xbf16, #tpu.memory_space<vmem>>, %arg5: memref<1x8xf32, #tpu.memory_space<vmem>>, %arg6: memref<2x8xf32, #tpu.memory_space<vmem>>) attributes {dimension_semantics = [], scalar_prefetch = 0 : i64, scratch_operands = 0 : i64, tpu.core_type = #tpu.core_type<tc>} {
    %c0 = arith.constant 0 : index
    %c0_0 = arith.constant 0 : index
    %0 = vector.load %arg0[%c0, %c0_0] : memref<64x16xbf16, #tpu.memory_space<vmem>>, vector<64x16xbf16>
    %c0_1 = arith.constant 0 : index
    %c0_2 = arith.constant 0 : index
    %1 = vector.load %arg1[%c0_1, %c0_2] : memref<16x128xbf16, #tpu.memory_space<vmem>>, vector<16x128xbf16>
    %cst = arith.constant dense<0.000000e+00> : vector<64x128xf32>
    %2 = tpu.matmul %0, %1, %cst {dimension_numbers = #tpu.dot_dimension_numbers<[1], [0], [0], [1], [0, 0, 1, 1], [], []>} : vector<64x16xbf16>, vector<16x128xbf16>, vector<64x128xf32> -> vector<64x128xf32>
    %c0_3 = arith.constant 0 : index
    %c0_4 = arith.constant 0 : index
    %3 = vector.load %arg3[%c0_3, %c0_4] : memref<1x128xf32, #tpu.memory_space<vmem>>, vector<1x128xf32>
    %4 = vector.broadcast %3 : vector<1x128xf32> to vector<64x128xf32>
    %5 = arith.addf %2, %4 : vector<64x128xf32>
    %c0_5 = arith.constant 0 : index
    %c0_6 = arith.constant 0 : index
    %6 = vector.load %arg2[%c0_5, %c0_6] : memref<32x128xbf16, #tpu.memory_space<vmem>>, vector<32x128xbf16>
    %7 = tpu.iota {dimensions = array<i32: 1>} : vector<8x128xi32>
    %c64_i32 = arith.constant 64 : i32
    %8 = vector.broadcast %c64_i32 : i32 to vector<8x128xi32>
    %9 = arith.cmpi sge, %7, %8 : vector<8x128xi32>
    %c96_i32 = arith.constant 96 : i32
    %10 = vector.broadcast %c96_i32 : i32 to vector<8x128xi32>
    %11 = arith.cmpi slt, %7, %10 : vector<8x128xi32>
    %12 = arith.andi %9, %11 : vector<8x128xi1>
    %cst_7 = arith.constant 0.000000e+00 : f32
    %13 = vector.broadcast %cst_7 : f32 to vector<8x32xf32>
    %cst_8 = arith.constant 0.000000e+00 : f32
    %14 = vector.broadcast %cst_8 : f32 to vector<8x32xf32>
    %15 = vector.extract_strided_slice %5 {offsets = [0, 0], sizes = [8, 128], strides = [1, 1]} : vector<64x128xf32> to vector<8x128xf32>
    %16 = arith.truncf %13 : vector<8x32xf32> to vector<8x32xbf16>
    %cst_9 = arith.constant dense<0.000000e+00> : vector<8x128xf32>
    %17 = tpu.matmul %16, %6, %cst_9 {dimension_numbers = #tpu.dot_dimension_numbers<[1], [0], [0], [1], [0, 0, 1, 1], [], []>} : vector<8x32xbf16>, vector<32x128xbf16>, vector<8x128xf32> -> vector<8x128xf32>
    %18 = arith.addf %15, %17 : vector<8x128xf32>
    %cst_10 = arith.constant 5.000000e-01 : f32
    %19 = vector.broadcast %cst_10 : f32 to vector<8x128xf32>
    %20 = arith.mulf %19, %18 : vector<8x128xf32>
    %21 = arith.select %12, %18, %20 : vector<8x128xi1>, vector<8x128xf32>
    %22 = math.tanh %21 : vector<8x128xf32>
    %cst_11 = arith.constant 5.000000e-01 : f32
    %23 = vector.broadcast %cst_11 : f32 to vector<8x128xf32>
    %24 = arith.mulf %23, %22 : vector<8x128xf32>
    %cst_12 = arith.constant 5.000000e-01 : f32
    %25 = vector.broadcast %cst_12 : f32 to vector<8x128xf32>
    %26 = arith.addf %24, %25 : vector<8x128xf32>
    %27 = arith.select %12, %22, %26 : vector<8x128xi1>, vector<8x128xf32>
    %28 = vector.extract_strided_slice %27 {offsets = [0, 0], sizes = [8, 32], strides = [1, 1]} : vector<8x128xf32> to vector<8x32xf32>
    %29 = vector.extract_strided_slice %27 {offsets = [0, 32], sizes = [8, 32], strides = [1, 1]} : vector<8x128xf32> to vector<8x32xf32>
    %30 = vector.extract_strided_slice %27 {offsets = [0, 64], sizes = [8, 32], strides = [1, 1]} : vector<8x128xf32> to vector<8x32xf32>
    %31 = vector.extract_strided_slice %27 {offsets = [0, 96], sizes = [8, 32], strides = [1, 1]} : vector<8x128xf32> to vector<8x32xf32>
    %32 = arith.mulf %29, %14 : vector<8x32xf32>
    %33 = arith.mulf %28, %30 : vector<8x32xf32>
    %34 = arith.addf %32, %33 : vector<8x32xf32>
    %35 = math.tanh %34 : vector<8x32xf32>
    %36 = arith.mulf %31, %35 : vector<8x32xf32>
    %37 = vector.extract_strided_slice %5 {offsets = [8, 0], sizes = [8, 128], strides = [1, 1]} : vector<64x128xf32> to vector<8x128xf32>
    %38 = arith.truncf %36 : vector<8x32xf32> to vector<8x32xbf16>
    %cst_13 = arith.constant dense<0.000000e+00> : vector<8x128xf32>
    %39 = tpu.matmul %38, %6, %cst_13 {dimension_numbers = #tpu.dot_dimension_numbers<[1], [0], [0], [1], [0, 0, 1, 1], [], []>} : vector<8x32xbf16>, vector<32x128xbf16>, vector<8x128xf32> -> vector<8x128xf32>
    %40 = arith.addf %37, %39 : vector<8x128xf32>
    %cst_14 = arith.constant 5.000000e-01 : f32
    %41 = vector.broadcast %cst_14 : f32 to vector<8x128xf32>
    %42 = arith.mulf %41, %40 : vector<8x128xf32>
    %43 = arith.select %12, %40, %42 : vector<8x128xi1>, vector<8x128xf32>
    %44 = math.tanh %43 : vector<8x128xf32>
    %cst_15 = arith.constant 5.000000e-01 : f32
    %45 = vector.broadcast %cst_15 : f32 to vector<8x128xf32>
    %46 = arith.mulf %45, %44 : vector<8x128xf32>
    %cst_16 = arith.constant 5.000000e-01 : f32
    %47 = vector.broadcast %cst_16 : f32 to vector<8x128xf32>
    %48 = arith.addf %46, %47 : vector<8x128xf32>
    %49 = arith.select %12, %44, %48 : vector<8x128xi1>, vector<8x128xf32>
    %50 = vector.extract_strided_slice %49 {offsets = [0, 0], sizes = [8, 32], strides = [1, 1]} : vector<8x128xf32> to vector<8x32xf32>
    %51 = vector.extract_strided_slice %49 {offsets = [0, 32], sizes = [8, 32], strides = [1, 1]} : vector<8x128xf32> to vector<8x32xf32>
    %52 = vector.extract_strided_slice %49 {offsets = [0, 64], sizes = [8, 32], strides = [1, 1]} : vector<8x128xf32> to vector<8x32xf32>
    %53 = vector.extract_strided_slice %49 {offsets = [0, 96], sizes = [8, 32], strides = [1, 1]} : vector<8x128xf32> to vector<8x32xf32>
    %54 = arith.mulf %51, %34 : vector<8x32xf32>
    %55 = arith.mulf %50, %52 : vector<8x32xf32>
    %56 = arith.addf %54, %55 : vector<8x32xf32>
    %57 = math.tanh %56 : vector<8x32xf32>
    %58 = arith.mulf %53, %57 : vector<8x32xf32>
    %59 = vector.extract_strided_slice %5 {offsets = [16, 0], sizes = [8, 128], strides = [1, 1]} : vector<64x128xf32> to vector<8x128xf32>
    %60 = arith.truncf %58 : vector<8x32xf32> to vector<8x32xbf16>
    %cst_17 = arith.constant dense<0.000000e+00> : vector<8x128xf32>
    %61 = tpu.matmul %60, %6, %cst_17 {dimension_numbers = #tpu.dot_dimension_numbers<[1], [0], [0], [1], [0, 0, 1, 1], [], []>} : vector<8x32xbf16>, vector<32x128xbf16>, vector<8x128xf32> -> vector<8x128xf32>
    %62 = arith.addf %59, %61 : vector<8x128xf32>
    %cst_18 = arith.constant 5.000000e-01 : f32
    %63 = vector.broadcast %cst_18 : f32 to vector<8x128xf32>
    %64 = arith.mulf %63, %62 : vector<8x128xf32>
    %65 = arith.select %12, %62, %64 : vector<8x128xi1>, vector<8x128xf32>
    %66 = math.tanh %65 : vector<8x128xf32>
    %cst_19 = arith.constant 5.000000e-01 : f32
    %67 = vector.broadcast %cst_19 : f32 to vector<8x128xf32>
    %68 = arith.mulf %67, %66 : vector<8x128xf32>
    %cst_20 = arith.constant 5.000000e-01 : f32
    %69 = vector.broadcast %cst_20 : f32 to vector<8x128xf32>
    %70 = arith.addf %68, %69 : vector<8x128xf32>
    %71 = arith.select %12, %66, %70 : vector<8x128xi1>, vector<8x128xf32>
    %72 = vector.extract_strided_slice %71 {offsets = [0, 0], sizes = [8, 32], strides = [1, 1]} : vector<8x128xf32> to vector<8x32xf32>
    %73 = vector.extract_strided_slice %71 {offsets = [0, 32], sizes = [8, 32], strides = [1, 1]} : vector<8x128xf32> to vector<8x32xf32>
    %74 = vector.extract_strided_slice %71 {offsets = [0, 64], sizes = [8, 32], strides = [1, 1]} : vector<8x128xf32> to vector<8x32xf32>
    %75 = vector.extract_strided_slice %71 {offsets = [0, 96], sizes = [8, 32], strides = [1, 1]} : vector<8x128xf32> to vector<8x32xf32>
    %76 = arith.mulf %73, %56 : vector<8x32xf32>
    %77 = arith.mulf %72, %74 : vector<8x32xf32>
    %78 = arith.addf %76, %77 : vector<8x32xf32>
    %79 = math.tanh %78 : vector<8x32xf32>
    %80 = arith.mulf %75, %79 : vector<8x32xf32>
    %81 = vector.extract_strided_slice %5 {offsets = [24, 0], sizes = [8, 128], strides = [1, 1]} : vector<64x128xf32> to vector<8x128xf32>
    %82 = arith.truncf %80 : vector<8x32xf32> to vector<8x32xbf16>
    %cst_21 = arith.constant dense<0.000000e+00> : vector<8x128xf32>
    %83 = tpu.matmul %82, %6, %cst_21 {dimension_numbers = #tpu.dot_dimension_numbers<[1], [0], [0], [1], [0, 0, 1, 1], [], []>} : vector<8x32xbf16>, vector<32x128xbf16>, vector<8x128xf32> -> vector<8x128xf32>
    %84 = arith.addf %81, %83 : vector<8x128xf32>
    %cst_22 = arith.constant 5.000000e-01 : f32
    %85 = vector.broadcast %cst_22 : f32 to vector<8x128xf32>
    %86 = arith.mulf %85, %84 : vector<8x128xf32>
    %87 = arith.select %12, %84, %86 : vector<8x128xi1>, vector<8x128xf32>
    %88 = math.tanh %87 : vector<8x128xf32>
    %cst_23 = arith.constant 5.000000e-01 : f32
    %89 = vector.broadcast %cst_23 : f32 to vector<8x128xf32>
    %90 = arith.mulf %89, %88 : vector<8x128xf32>
    %cst_24 = arith.constant 5.000000e-01 : f32
    %91 = vector.broadcast %cst_24 : f32 to vector<8x128xf32>
    %92 = arith.addf %90, %91 : vector<8x128xf32>
    %93 = arith.select %12, %88, %92 : vector<8x128xi1>, vector<8x128xf32>
    %94 = vector.extract_strided_slice %93 {offsets = [0, 0], sizes = [8, 32], strides = [1, 1]} : vector<8x128xf32> to vector<8x32xf32>
    %95 = vector.extract_strided_slice %93 {offsets = [0, 32], sizes = [8, 32], strides = [1, 1]} : vector<8x128xf32> to vector<8x32xf32>
    %96 = vector.extract_strided_slice %93 {offsets = [0, 64], sizes = [8, 32], strides = [1, 1]} : vector<8x128xf32> to vector<8x32xf32>
    %97 = vector.extract_strided_slice %93 {offsets = [0, 96], sizes = [8, 32], strides = [1, 1]} : vector<8x128xf32> to vector<8x32xf32>
    %98 = arith.mulf %95, %78 : vector<8x32xf32>
    %99 = arith.mulf %94, %96 : vector<8x32xf32>
    %100 = arith.addf %98, %99 : vector<8x32xf32>
    %101 = math.tanh %100 : vector<8x32xf32>
    %102 = arith.mulf %97, %101 : vector<8x32xf32>
    %103 = vector.extract_strided_slice %5 {offsets = [32, 0], sizes = [8, 128], strides = [1, 1]} : vector<64x128xf32> to vector<8x128xf32>
    %104 = arith.truncf %102 : vector<8x32xf32> to vector<8x32xbf16>
    %cst_25 = arith.constant dense<0.000000e+00> : vector<8x128xf32>
    %105 = tpu.matmul %104, %6, %cst_25 {dimension_numbers = #tpu.dot_dimension_numbers<[1], [0], [0], [1], [0, 0, 1, 1], [], []>} : vector<8x32xbf16>, vector<32x128xbf16>, vector<8x128xf32> -> vector<8x128xf32>
    %106 = arith.addf %103, %105 : vector<8x128xf32>
    %cst_26 = arith.constant 5.000000e-01 : f32
    %107 = vector.broadcast %cst_26 : f32 to vector<8x128xf32>
    %108 = arith.mulf %107, %106 : vector<8x128xf32>
    %109 = arith.select %12, %106, %108 : vector<8x128xi1>, vector<8x128xf32>
    %110 = math.tanh %109 : vector<8x128xf32>
    %cst_27 = arith.constant 5.000000e-01 : f32
    %111 = vector.broadcast %cst_27 : f32 to vector<8x128xf32>
    %112 = arith.mulf %111, %110 : vector<8x128xf32>
    %cst_28 = arith.constant 5.000000e-01 : f32
    %113 = vector.broadcast %cst_28 : f32 to vector<8x128xf32>
    %114 = arith.addf %112, %113 : vector<8x128xf32>
    %115 = arith.select %12, %110, %114 : vector<8x128xi1>, vector<8x128xf32>
    %116 = vector.extract_strided_slice %115 {offsets = [0, 0], sizes = [8, 32], strides = [1, 1]} : vector<8x128xf32> to vector<8x32xf32>
    %117 = vector.extract_strided_slice %115 {offsets = [0, 32], sizes = [8, 32], strides = [1, 1]} : vector<8x128xf32> to vector<8x32xf32>
    %118 = vector.extract_strided_slice %115 {offsets = [0, 64], sizes = [8, 32], strides = [1, 1]} : vector<8x128xf32> to vector<8x32xf32>
    %119 = vector.extract_strided_slice %115 {offsets = [0, 96], sizes = [8, 32], strides = [1, 1]} : vector<8x128xf32> to vector<8x32xf32>
    %120 = arith.mulf %117, %100 : vector<8x32xf32>
    %121 = arith.mulf %116, %118 : vector<8x32xf32>
    %122 = arith.addf %120, %121 : vector<8x32xf32>
    %123 = math.tanh %122 : vector<8x32xf32>
    %124 = arith.mulf %119, %123 : vector<8x32xf32>
    %125 = vector.extract_strided_slice %5 {offsets = [40, 0], sizes = [8, 128], strides = [1, 1]} : vector<64x128xf32> to vector<8x128xf32>
    %126 = arith.truncf %124 : vector<8x32xf32> to vector<8x32xbf16>
    %cst_29 = arith.constant dense<0.000000e+00> : vector<8x128xf32>
    %127 = tpu.matmul %126, %6, %cst_29 {dimension_numbers = #tpu.dot_dimension_numbers<[1], [0], [0], [1], [0, 0, 1, 1], [], []>} : vector<8x32xbf16>, vector<32x128xbf16>, vector<8x128xf32> -> vector<8x128xf32>
    %128 = arith.addf %125, %127 : vector<8x128xf32>
    %cst_30 = arith.constant 5.000000e-01 : f32
    %129 = vector.broadcast %cst_30 : f32 to vector<8x128xf32>
    %130 = arith.mulf %129, %128 : vector<8x128xf32>
    %131 = arith.select %12, %128, %130 : vector<8x128xi1>, vector<8x128xf32>
    %132 = math.tanh %131 : vector<8x128xf32>
    %cst_31 = arith.constant 5.000000e-01 : f32
    %133 = vector.broadcast %cst_31 : f32 to vector<8x128xf32>
    %134 = arith.mulf %133, %132 : vector<8x128xf32>
    %cst_32 = arith.constant 5.000000e-01 : f32
    %135 = vector.broadcast %cst_32 : f32 to vector<8x128xf32>
    %136 = arith.addf %134, %135 : vector<8x128xf32>
    %137 = arith.select %12, %132, %136 : vector<8x128xi1>, vector<8x128xf32>
    %138 = vector.extract_strided_slice %137 {offsets = [0, 0], sizes = [8, 32], strides = [1, 1]} : vector<8x128xf32> to vector<8x32xf32>
    %139 = vector.extract_strided_slice %137 {offsets = [0, 32], sizes = [8, 32], strides = [1, 1]} : vector<8x128xf32> to vector<8x32xf32>
    %140 = vector.extract_strided_slice %137 {offsets = [0, 64], sizes = [8, 32], strides = [1, 1]} : vector<8x128xf32> to vector<8x32xf32>
    %141 = vector.extract_strided_slice %137 {offsets = [0, 96], sizes = [8, 32], strides = [1, 1]} : vector<8x128xf32> to vector<8x32xf32>
    %142 = arith.mulf %139, %122 : vector<8x32xf32>
    %143 = arith.mulf %138, %140 : vector<8x32xf32>
    %144 = arith.addf %142, %143 : vector<8x32xf32>
    %145 = math.tanh %144 : vector<8x32xf32>
    %146 = arith.mulf %141, %145 : vector<8x32xf32>
    %147 = vector.extract_strided_slice %5 {offsets = [48, 0], sizes = [8, 128], strides = [1, 1]} : vector<64x128xf32> to vector<8x128xf32>
    %148 = arith.truncf %146 : vector<8x32xf32> to vector<8x32xbf16>
    %cst_33 = arith.constant dense<0.000000e+00> : vector<8x128xf32>
    %149 = tpu.matmul %148, %6, %cst_33 {dimension_numbers = #tpu.dot_dimension_numbers<[1], [0], [0], [1], [0, 0, 1, 1], [], []>} : vector<8x32xbf16>, vector<32x128xbf16>, vector<8x128xf32> -> vector<8x128xf32>
    %150 = arith.addf %147, %149 : vector<8x128xf32>
    %cst_34 = arith.constant 5.000000e-01 : f32
    %151 = vector.broadcast %cst_34 : f32 to vector<8x128xf32>
    %152 = arith.mulf %151, %150 : vector<8x128xf32>
    %153 = arith.select %12, %150, %152 : vector<8x128xi1>, vector<8x128xf32>
    %154 = math.tanh %153 : vector<8x128xf32>
    %cst_35 = arith.constant 5.000000e-01 : f32
    %155 = vector.broadcast %cst_35 : f32 to vector<8x128xf32>
    %156 = arith.mulf %155, %154 : vector<8x128xf32>
    %cst_36 = arith.constant 5.000000e-01 : f32
    %157 = vector.broadcast %cst_36 : f32 to vector<8x128xf32>
    %158 = arith.addf %156, %157 : vector<8x128xf32>
    %159 = arith.select %12, %154, %158 : vector<8x128xi1>, vector<8x128xf32>
    %160 = vector.extract_strided_slice %159 {offsets = [0, 0], sizes = [8, 32], strides = [1, 1]} : vector<8x128xf32> to vector<8x32xf32>
    %161 = vector.extract_strided_slice %159 {offsets = [0, 32], sizes = [8, 32], strides = [1, 1]} : vector<8x128xf32> to vector<8x32xf32>
    %162 = vector.extract_strided_slice %159 {offsets = [0, 64], sizes = [8, 32], strides = [1, 1]} : vector<8x128xf32> to vector<8x32xf32>
    %163 = vector.extract_strided_slice %159 {offsets = [0, 96], sizes = [8, 32], strides = [1, 1]} : vector<8x128xf32> to vector<8x32xf32>
    %164 = arith.mulf %161, %144 : vector<8x32xf32>
    %165 = arith.mulf %160, %162 : vector<8x32xf32>
    %166 = arith.addf %164, %165 : vector<8x32xf32>
    %167 = math.tanh %166 : vector<8x32xf32>
    %168 = arith.mulf %163, %167 : vector<8x32xf32>
    %169 = vector.extract_strided_slice %5 {offsets = [56, 0], sizes = [8, 128], strides = [1, 1]} : vector<64x128xf32> to vector<8x128xf32>
    %170 = arith.truncf %168 : vector<8x32xf32> to vector<8x32xbf16>
    %cst_37 = arith.constant dense<0.000000e+00> : vector<8x128xf32>
    %171 = tpu.matmul %170, %6, %cst_37 {dimension_numbers = #tpu.dot_dimension_numbers<[1], [0], [0], [1], [0, 0, 1, 1], [], []>} : vector<8x32xbf16>, vector<32x128xbf16>, vector<8x128xf32> -> vector<8x128xf32>
    %172 = arith.addf %169, %171 : vector<8x128xf32>
    %cst_38 = arith.constant 5.000000e-01 : f32
    %173 = vector.broadcast %cst_38 : f32 to vector<8x128xf32>
    %174 = arith.mulf %173, %172 : vector<8x128xf32>
    %175 = arith.select %12, %172, %174 : vector<8x128xi1>, vector<8x128xf32>
    %176 = math.tanh %175 : vector<8x128xf32>
    %cst_39 = arith.constant 5.000000e-01 : f32
    %177 = vector.broadcast %cst_39 : f32 to vector<8x128xf32>
    %178 = arith.mulf %177, %176 : vector<8x128xf32>
    %cst_40 = arith.constant 5.000000e-01 : f32
    %179 = vector.broadcast %cst_40 : f32 to vector<8x128xf32>
    %180 = arith.addf %178, %179 : vector<8x128xf32>
    %181 = arith.select %12, %176, %180 : vector<8x128xi1>, vector<8x128xf32>
    %182 = vector.extract_strided_slice %181 {offsets = [0, 0], sizes = [8, 32], strides = [1, 1]} : vector<8x128xf32> to vector<8x32xf32>
    %183 = vector.extract_strided_slice %181 {offsets = [0, 32], sizes = [8, 32], strides = [1, 1]} : vector<8x128xf32> to vector<8x32xf32>
    %184 = vector.extract_strided_slice %181 {offsets = [0, 64], sizes = [8, 32], strides = [1, 1]} : vector<8x128xf32> to vector<8x32xf32>
    %185 = vector.extract_strided_slice %181 {offsets = [0, 96], sizes = [8, 32], strides = [1, 1]} : vector<8x128xf32> to vector<8x32xf32>
    %186 = arith.mulf %183, %166 : vector<8x32xf32>
    %187 = arith.mulf %182, %184 : vector<8x32xf32>
    %188 = arith.addf %186, %187 : vector<8x32xf32>
    %189 = math.tanh %188 : vector<8x32xf32>
    %190 = arith.mulf %185, %189 : vector<8x32xf32>
    %191 = arith.truncf %190 : vector<8x32xf32> to vector<8x32xbf16>
    %c0_41 = arith.constant 0 : index
    %c0_42 = arith.constant 0 : index
    %192 = vector.load %arg4[%c0_41, %c0_42] : memref<32x8xbf16, #tpu.memory_space<vmem>>, vector<32x8xbf16>
    %cst_43 = arith.constant dense<0.000000e+00> : vector<8x8xf32>
    %193 = tpu.matmul %191, %192, %cst_43 {dimension_numbers = #tpu.dot_dimension_numbers<[1], [0], [0], [1], [0, 0, 1, 1], [], []>} : vector<8x32xbf16>, vector<32x8xbf16>, vector<8x8xf32> -> vector<8x8xf32>
    %c0_44 = arith.constant 0 : index
    %c0_45 = arith.constant 0 : index
    %194 = vector.load %arg5[%c0_44, %c0_45] : memref<1x8xf32, #tpu.memory_space<vmem>>, vector<1x8xf32>
    %195 = vector.broadcast %194 : vector<1x8xf32> to vector<8x8xf32>
    %196 = arith.addf %193, %195 : vector<8x8xf32>
    %197 = vector.extract_strided_slice %196 {offsets = [0, 0], sizes = [2, 8], strides = [1, 1]} : vector<8x8xf32> to vector<2x8xf32>
    %c0_46 = arith.constant 0 : index
    %c0_47 = arith.constant 0 : index
    %198 = vector.load %arg6[%c0_46, %c0_47] : memref<2x8xf32, #tpu.memory_space<vmem>>, vector<2x8xf32>
    tpu.vector_store %arg6[%c0_46, %c0_47], %197 {strides = array<i32>} : memref<2x8xf32, #tpu.memory_space<vmem>>, vector<2x8xf32>,
    return
  }
}

</mosaic_0001>

<llo_original>
// kernel: tpu_custom_call.1
$region0: #{tpu_custom_call.1}
  #allocation0 [shape = 'u32[]', space=smem, size = 0x4, offset = 0x4, fixed_abs, tag = 'smem constant byte address 0x4 - core index']
  #allocation1 [shape = 'u32[144,128]{1,0:T(1,128)}', space=vmem, size = 0x12000, scoped, tag = 'internal scratch']
  %s0 = inlined_call_operand.vmem [shape: bf16[64,16], index: 0, kind: input, shape index: {}]
  %s1 = inlined_call_operand.vmem [shape: bf16[16,128], index: 1, kind: input, shape index: {}]
  %s2 = inlined_call_operand.vmem [shape: bf16[32,128], index: 2, kind: input, shape index: {}]
  %s3 = inlined_call_operand.vmem [shape: f32[1,128], index: 3, kind: input, shape index: {}]
  %s4 = inlined_call_operand.vmem [shape: bf16[32,8], index: 4, kind: input, shape index: {}]
  %s5 = inlined_call_operand.vmem [shape: f32[1,8], index: 5, kind: input, shape index: {}]
  %s6 = inlined_call_operand.hbm [shape: f32[2,8], index: 6, kind: output, shape index: {}]
  %s7 = sld [smem:[#allocation0]]
  $region34: #{tpu_custom_call.1} parent=0
    _
  %s9 = ssub.s32 1, %s7
  %s10 = scalar_select 0, %s9, %s7
  $region1: #{tpu_custom_call.1} parent=0
    #allocation2 [shape = 'u8[1024]{0}', space=vmem, size = 0x400, scoped, tag = 'output window, operand 0, single buffered']
    #allocation3 [shape = 's32[1]{0}', space=sflag, size = 0x4, scoped, tag = 'scoped memory for tpu_custom_call.1']
    %11 = vsyncpa [#allocation3], 0
    // Predicated region
    $region2: #{tpu_custom_call.1} parent=1 // pred_check
      _
    $region3: #{tpu_custom_call.1} parent=1 // pred_check_branch
      %13 = sbr.rel (0) target = $region5
    $region4: #{tpu_custom_call.1} parent=1 // pred_region
      _
    $region5: #{tpu_custom_call.1} parent=1 // pred_fallthru
      _
    // Predicated region
    $region6: #{tpu_custom_call.1} parent=1 // pred_check
      _
    $region7: #{tpu_custom_call.1} parent=1 // pred_check_branch
      %15 = sbr.rel (0) target = $region9
    $region8: #{tpu_custom_call.1} parent=1 // pred_region
      _
    $region9: #{tpu_custom_call.1} parent=1 // pred_fallthru
      _
    // Predicated region
    $region10: #{tpu_custom_call.1} parent=1 // pred_check
      _
    $region11: #{tpu_custom_call.1} parent=1 // pred_check_branch
      %17 = sbr.rel (0) target = $region13
    $region12: #{tpu_custom_call.1} parent=1 // pred_region
      _
    $region13: #{tpu_custom_call.1} parent=1 // pred_fallthru
      _
    // Predicated region
    $region14: #{tpu_custom_call.1} parent=1 // pred_check
      _
    $region15: #{tpu_custom_call.1} parent=1 // pred_check_branch
      %19 = sbr.rel (0) target = $region17
    $region16: #{tpu_custom_call.1} parent=1 // pred_region
      _
    $region17: #{tpu_custom_call.1} parent=1 // pred_fallthru
      _
    // Predicated region
    $region18: #{tpu_custom_call.1} parent=1 // pred_check
      _
    $region19: #{tpu_custom_call.1} parent=1 // pred_check_branch
      %21 = sbr.rel (0) target = $region21
    $region20: #{tpu_custom_call.1} parent=1 // pred_region
      _
    $region21: #{tpu_custom_call.1} parent=1 // pred_fallthru
      _
    // Predicated region
    $region22: #{tpu_custom_call.1} parent=1 // pred_check
      _
    $region23: #{tpu_custom_call.1} parent=1 // pred_check_branch
      %23 = sbr.rel (0) target = $region25
    $region24: #{tpu_custom_call.1} parent=1 // pred_region
      _
    $region25: #{tpu_custom_call.1} parent=1 // pred_fallthru
      _
    %v25 = vld [vmem:[%s0] sm:$0xf]
    %v26 = vld [vmem:[%s0 + $0x4] sm:$0xf]
    %v27 = vld [vmem:[%s0 + $0x8] sm:$0xf]
    %v28 = vld [vmem:[%s0 + $0xc] sm:$0xf]
    %v29 = vld [vmem:[%s0 + $0x10] sm:$0xf]
    %v30 = vld [vmem:[%s0 + $0x14] sm:$0xf]
    %v31 = vld [vmem:[%s0 + $0x18] sm:$0xf]
    %v32 = vld [vmem:[%s0 + $0x1c] sm:$0xf]
    %v33 = vld [vmem:[%s1] sm:$0xf]
    %v34 = vld [vmem:[%s1 + $0x4] sm:$0xf]
    %v35 = vld [vmem:[%s3] sm:$0x1]
    %v37 = vlaneseq
    %v38 = vshrl.u32 %v37, 7
    %v39 = vsub.s32 0, %v38
    %v40 = vrot.slane %v35, %v39
    %v50 = vunpack.c.l.b16 %v25
    %v51 = vunpack.c.l.b16 %v26
    %v52 = vunpack.c.l.b16 %v27
    %v53 = vunpack.c.l.b16 %v28
    %v54 = vunpack.c.l.b16 %v29
    %v55 = vunpack.c.l.b16 %v30
    %v56 = vunpack.c.l.b16 %v31
    %v57 = vunpack.c.l.b16 %v32
    %v58 = vpack.c.b16 %v51, %v50
    %v59 = vpack.c.b16 %v53, %v52
    %v60 = vpack.c.b16 %v55, %v54
    %v61 = vpack.c.b16 %v57, %v56
    %v64 = vunpack.c.l.b16 %v33
    %v65 = vunpack.c.l.b16 %v34
    %v66 = vpack.c.b16 %v65, %v64
    %vm68 = vcmask 130048
    %v70 = vsel %vm68, %v58, 0
    %v73 = vsel %vm68, %v59, 0
    %v76 = vsel %vm68, %v60, 0
    %v79 = vsel %vm68, %v61, 0
    %81 = vmatprep.subr.bf16.mxu0 0
    %82 = vmatpush1.bf16.msra.mxu0 0
    %83 = vmatprep.subr.bf16.mxu0 0
    %84 = vmatpush1.bf16.msra.mxu0 0
    %85 = vmatprep.subr.bf16.mxu0 0
    %86 = vmatpush1.bf16.msra.mxu0 0
    %87 = vmatprep.subr.bf16.mxu0 0
    %88 = vmatpush1.bf16.msra.mxu0 0
    %89 = vmatprep.subr.bf16.mxu0 0
    %90 = vmatpush1.bf16.msra.mxu0 0
    %91 = vmatprep.subr.bf16.mxu0 0
    %92 = vmatpush1.bf16.msra.mxu0 0
    %93 = vmatprep.subr.bf16.mxu0 0
    %94 = vmatpush1.bf16.msra.mxu0 0
    %95 = vmatprep.subr.bf16.mxu0 0
    %96 = vmatpush1.bf16.msra.mxu0 %v66
    %97 = vmatprep.subr.bf16.mxu0 0
    %98 = vmatpush2.bf16.msra.mxu0 0
    %99 = vmatprep.subr.bf16.mxu0 0
    %100 = vmatpush2.bf16.msra.mxu0 0
    %101 = vmatprep.subr.bf16.mxu0 0
    %102 = vmatpush2.bf16.msra.mxu0 0
    %103 = vmatprep.subr.bf16.mxu0 0
    %104 = vmatpush2.bf16.msra.mxu0 0
    %105 = vmatprep.subr.bf16.mxu0 0
    %106 = vmatpush2.bf16.msra.mxu0 0
    %107 = vmatprep.subr.bf16.mxu0 0
    %108 = vmatpush2.bf16.msra.mxu0 0
    %109 = vmatprep.subr.bf16.mxu0 0
    %110 = vmatpush2.bf16.msra.mxu0 0
    %111 = vmatprep.subr.bf16.mxu0 0
    %112 = vmatpush2.bf16.msra.mxu0 0
    %113 = vmatprep.mubr.bf16.mxu0 0
    %114 = vmatmul.mubr.bf16.gmra.mxu0 %v70
    %v115 = vpop.f32.mrf.mxu0
    %v116 = vadd.f32 %v40, %v115
    %v117 = vpop.f32.mrf.mxu0
    %v118 = vpop.f32.mrf.mxu0
    %v119 = vadd.f32 %v40, %v118
    %v120 = vpop.f32.mrf.mxu0
    %121 = vmatprep.mubr.bf16.mxu0 0
    %122 = vmatmul.mubr.bf16.gmra.mxu0 %v73
    %v123 = vpop.f32.mrf.mxu0
    %v124 = vadd.f32 %v40, %v123
    %v125 = vpop.f32.mrf.mxu0
    %v126 = vpop.f32.mrf.mxu0
    %v127 = vadd.f32 %v40, %v126
    %v128 = vpop.f32.mrf.mxu0
    %129 = vmatprep.mubr.bf16.mxu0 0
    %130 = vmatmul.mubr.bf16.gmra.mxu0 %v76
    %v131 = vpop.f32.mrf.mxu0
    %v132 = vadd.f32 %v40, %v131
    %v133 = vpop.f32.mrf.mxu0
    %v134 = vpop.f32.mrf.mxu0
    %v135 = vadd.f32 %v40, %v134
    %v136 = vpop.f32.mrf.mxu0
    %137 = vmatprep.mubr.bf16.mxu0 0
    %138 = vmatmul.mubr.bf16.gmra.mxu0 %v79
    %v139 = vpop.f32.mrf.mxu0
    %v140 = vadd.f32 %v40, %v139
    %v141 = vpop.f32.mrf.mxu0
    %v142 = vpop.f32.mrf.mxu0
    %v143 = vadd.f32 %v40, %v142
    %v144 = vpop.f32.mrf.mxu0
    %145 = vdwg.mxu0
    %v146 = vld [vmem:[%s2] sm:$0xf]
    %v147 = vld [vmem:[%s2 + $0x4] sm:$0xf]
    %v148 = vld [vmem:[%s2 + $0x8] sm:$0xf]
    %v149 = vld [vmem:[%s2 + $0xc] sm:$0xf]
    %v150 = vlaneseq
    %v151 = vand.u32 %v150, 127
    %vm152 = vcmp.ge.s32.totalorder %v151, 64
    %vm153 = vcmp.lt.s32.totalorder %v151, 96
    %vm154 = vmand %vm152, %vm153
    %v159 = vunpack.c.l.b16 %v146
    %v160 = vunpack.c.l.b16 %v147
    %v161 = vunpack.c.l.b16 %v148
    %v162 = vunpack.c.l.b16 %v149
    %v163 = vpack.c.b16 %v160, %v159
    %v164 = vpack.c.b16 %v162, %v161
    %vm167 = vcmask 261120
    %v169 = vsel %vm167, 0, 0
    %171 = vmatprep.subr.bf16.mxu0 0
    %172 = vmatpush1.bf16.msra.mxu0 0
    %173 = vmatprep.subr.bf16.mxu0 0
    %174 = vmatpush1.bf16.msra.mxu0 0
    %175 = vmatprep.subr.bf16.mxu0 0
    %176 = vmatpush1.bf16.msra.mxu0 0
    %177 = vmatprep.subr.bf16.mxu0 0
    %178 = vmatpush1.bf16.msra.mxu0 0
    %179 = vmatprep.subr.bf16.mxu0 0
    %180 = vmatpush1.bf16.msra.mxu0 0
    %181 = vmatprep.subr.bf16.mxu0 0
    %182 = vmatpush1.bf16.msra.mxu0 0
    %183 = vmatprep.subr.bf16.mxu0 0
    %184 = vmatpush1.bf16.msra.mxu0 %v164
    %185 = vmatprep.subr.bf16.mxu0 0
    %186 = vmatpush1.bf16.msra.mxu0 %v163
    %187 = vmatprep.subr.bf16.mxu0 0
    %188 = vmatpush2.bf16.msra.mxu0 0
    %189 = vmatprep.subr.bf16.mxu0 0
    %190 = vmatpush2.bf16.msra.mxu0 0
    %191 = vmatprep.subr.bf16.mxu0 0
    %192 = vmatpush2.bf16.msra.mxu0 0
    %193 = vmatprep.subr.bf16.mxu0 0
    %194 = vmatpush2.bf16.msra.mxu0 0
    %195 = vmatprep.subr.bf16.mxu0 0
    %196 = vmatpush2.bf16.msra.mxu0 0
    %197 = vmatprep.subr.bf16.mxu0 0
    %198 = vmatpush2.bf16.msra.mxu0 0
    %199 = vmatprep.subr.bf16.mxu0 0
    %200 = vmatpush2.bf16.msra.mxu0 0
    %201 = vmatprep.subr.bf16.mxu0 0
    %202 = vmatpush2.bf16.msra.mxu0 0
    %203 = vmatprep.mubr.bf16.mxu0 0
    %204 = vmatmul.mubr.bf16.gmra.mxu0 %v169
    %v205 = vpop.f32.mrf.mxu0
    %v206 = vadd.f32 0.0, %v205
    %v207 = vpop.f32.mrf.mxu0
    %v208 = vpop.f32.mrf.mxu0
    %v209 = vpop.f32.mrf.mxu0
    %210 = vdwg.mxu0
    %v211 = vadd.f32 %v116, %v206
    %v212 = vmul.f32 %v211, 0.5
    %v213 = vsel %vm154, %v211, %v212
    %v214 = vtanh.pop %v213
    %v215 = vmul.f32 %v214, 0.5
    %v216 = vadd.f32 %v215, 0.5
    %v217 = vsel %vm154, %v214, %v216
    %v218 = vmul.f32 %v217, 0.0
    %220 = vrot.lane.b32.xlu0 %v217, 64
    %v221 = vpop.permute.xlu0 %220
    %v223 = vmul.f32 %v217, %v221
    %225 = vrot.lane.b32.xlu0 %v223, 32
    %v226 = vpop.permute.xlu0 %225
    %v228 = vadd.f32 %v218, %v226
    %v229 = vtanh.pop %v228
    %231 = vrot.lane.b32.xlu0 %v229, 64
    %v232 = vpop.permute.xlu0 %231
    %v234 = vmul.f32 %v217, %v232
    %v235 = vpack.c.bf16 %v234, %v234
    %237 = vrot.lane.b32.xlu0 %v235, 32
    %v238 = vpop.permute.xlu0 %237
    %v240 = vsel %vm167, %v238, 0
    %242 = vmatprep.subr.bf16.mxu0 0
    %243 = vmatpush1.bf16.msra.mxu0 0
    %244 = vmatprep.subr.bf16.mxu0 0
    %245 = vmatpush1.bf16.msra.mxu0 0
    %246 = vmatprep.subr.bf16.mxu0 0
    %247 = vmatpush1.bf16.msra.mxu0 0
    %248 = vmatprep.subr.bf16.mxu0 0
    %249 = vmatpush1.bf16.msra.mxu0 0
    %250 = vmatprep.subr.bf16.mxu0 0
    %251 = vmatpush1.bf16.msra.mxu0 0
    %252 = vmatprep.subr.bf16.mxu0 0
    %253 = vmatpush1.bf16.msra.mxu0 0
    %254 = vmatprep.subr.bf16.mxu0 0
    %255 = vmatpush1.bf16.msra.mxu0 %v164
    %256 = vmatprep.subr.bf16.mxu0 0
    %257 = vmatpush1.bf16.msra.mxu0 %v163
    %258 = vmatprep.subr.bf16.mxu0 0
    %259 = vmatpush2.bf16.msra.mxu0 0
    %260 = vmatprep.subr.bf16.mxu0 0
    %261 = vmatpush2.bf16.msra.mxu0 0
    %262 = vmatprep.subr.bf16.mxu0 0
    %263 = vmatpush2.bf16.msra.mxu0 0
    %264 = vmatprep.subr.bf16.mxu0 0
    %265 = vmatpush2.bf16.msra.mxu0 0
    %266 = vmatprep.subr.bf16.mxu0 0
    %267 = vmatpush2.bf16.msra.mxu0 0
    %268 = vmatprep.subr.bf16.mxu0 0
    %269 = vmatpush2.bf16.msra.mxu0 0
    %270 = vmatprep.subr.bf16.mxu0 0
    %271 = vmatpush2.bf16.msra.mxu0 0
    %272 = vmatprep.subr.bf16.mxu0 0
    %273 = vmatpush2.bf16.msra.mxu0 0
    %274 = vmatprep.mubr.bf16.mxu0 0
    %275 = vmatmul.mubr.bf16.gmra.mxu0 %v240
    %v276 = vpop.f32.mrf.mxu0
    %v277 = vadd.f32 0.0, %v276
    %v278 = vpop.f32.mrf.mxu0
    %v279 = vpop.f32.mrf.mxu0
    %v280 = vpop.f32.mrf.mxu0
    %281 = vdwg.mxu0
    %v282 = vadd.f32 %v119, %v277
    %v283 = vmul.f32 %v282, 0.5
    %v284 = vsel %vm154, %v282, %v283
    %v285 = vtanh.pop %v284
    %v286 = vmul.f32 %v285, 0.5
    %v287 = vadd.f32 %v286, 0.5
    %v288 = vsel %vm154, %v285, %v287
    %v289 = vmul.f32 %v288, %v228
    %291 = vrot.lane.b32.xlu0 %v288, 64
    %v292 = vpop.permute.xlu0 %291
    %v294 = vmul.f32 %v288, %v292
    %296 = vrot.lane.b32.xlu0 %v294, 32
    %v297 = vpop.permute.xlu0 %296
    %v299 = vadd.f32 %v289, %v297
    %v300 = vtanh.pop %v299
    %302 = vrot.lane.b32.xlu0 %v300, 64
    %v303 = vpop.permute.xlu0 %302
    %v305 = vmul.f32 %v288, %v303
    %v306 = vpack.c.bf16 %v305, %v305
    %308 = vrot.lane.b32.xlu0 %v306, 32
    %v309 = vpop.permute.xlu0 %308
    %v311 = vsel %vm167, %v309, 0
    %313 = vmatprep.subr.bf16.mxu0 0
    %314 = vmatpush1.bf16.msra.mxu0 0
    %315 = vmatprep.subr.bf16.mxu0 0
    %316 = vmatpush1.bf16.msra.mxu0 0
    %317 = vmatprep.subr.bf16.mxu0 0
    %318 = vmatpush1.bf16.msra.mxu0 0
    %319 = vmatprep.subr.bf16.mxu0 0
    %320 = vmatpush1.bf16.msra.mxu0 0
    %321 = vmatprep.subr.bf16.mxu0 0
    %322 = vmatpush1.bf16.msra.mxu0 0
    %323 = vmatprep.subr.bf16.mxu0 0
    %324 = vmatpush1.bf16.msra.mxu0 0
    %325 = vmatprep.subr.bf16.mxu0 0
    %326 = vmatpush1.bf16.msra.mxu0 %v164
    %327 = vmatprep.subr.bf16.mxu0 0
    %328 = vmatpush1.bf16.msra.mxu0 %v163
    %329 = vmatprep.subr.bf16.mxu0 0
    %330 = vmatpush2.bf16.msra.mxu0 0
    %331 = vmatprep.subr.bf16.mxu0 0
    %332 = vmatpush2.bf16.msra.mxu0 0
    %333 = vmatprep.subr.bf16.mxu0 0
    %334 = vmatpush2.bf16.msra.mxu0 0
    %335 = vmatprep.subr.bf16.mxu0 0
    %336 = vmatpush2.bf16.msra.mxu0 0
    %337 = vmatprep.subr.bf16.mxu0 0
    %338 = vmatpush2.bf16.msra.mxu0 0
    %339 = vmatprep.subr.bf16.mxu0 0
    %340 = vmatpush2.bf16.msra.mxu0 0
    %341 = vmatprep.subr.bf16.mxu0 0
    %342 = vmatpush2.bf16.msra.mxu0 0
    %343 = vmatprep.subr.bf16.mxu0 0
    %344 = vmatpush2.bf16.msra.mxu0 0
    %345 = vmatprep.mubr.bf16.mxu0 0
    %346 = vmatmul.mubr.bf16.gmra.mxu0 %v311
    %v347 = vpop.f32.mrf.mxu0
    %v348 = vadd.f32 0.0, %v347
    %v349 = vpop.f32.mrf.mxu0
    %v350 = vpop.f32.mrf.mxu0
    %v351 = vpop.f32.mrf.mxu0
    %352 = vdwg.mxu0
    %v353 = vadd.f32 %v124, %v348
    %v354 = vmul.f32 %v353, 0.5
    %v355 = vsel %vm154, %v353, %v354
    %v356 = vtanh.pop %v355
    %v357 = vmul.f32 %v356, 0.5
    %v358 = vadd.f32 %v357, 0.5
    %v359 = vsel %vm154, %v356, %v358
    %v360 = vmul.f32 %v359, %v299
    %362 = vrot.lane.b32.xlu0 %v359, 64
    %v363 = vpop.permute.xlu0 %362
    %v365 = vmul.f32 %v359, %v363
    %367 = vrot.lane.b32.xlu0 %v365, 32
    %v368 = vpop.permute.xlu0 %367
    %v370 = vadd.f32 %v360, %v368
    %v371 = vtanh.pop %v370
    %373 = vrot.lane.b32.xlu0 %v371, 64
    %v374 = vpop.permute.xlu0 %373
    %v376 = vmul.f32 %v359, %v374
    %v377 = vpack.c.bf16 %v376, %v376
    %379 = vrot.lane.b32.xlu0 %v377, 32
    %v380 = vpop.permute.xlu0 %379
    %v382 = vsel %vm167, %v380, 0
    %384 = vmatprep.subr.bf16.mxu0 0
    %385 = vmatpush1.bf16.msra.mxu0 0
    %386 = vmatprep.subr.bf16.mxu0 0
    %387 = vmatpush1.bf16.msra.mxu0 0
    %388 = vmatprep.subr.bf16.mxu0 0
    %389 = vmatpush1.bf16.msra.mxu0 0
    %390 = vmatprep.subr.bf16.mxu0 0
    %391 = vmatpush1.bf16.msra.mxu0 0
    %392 = vmatprep.subr.bf16.mxu0 0
    %393 = vmatpush1.bf16.msra.mxu0 0
    %394 = vmatprep.subr.bf16.mxu0 0
    %395 = vmatpush1.bf16.msra.mxu0 0
    %396 = vmatprep.subr.bf16.mxu0 0
    %397 = vmatpush1.bf16.msra.mxu0 %v164
    %398 = vmatprep.subr.bf16.mxu0 0
    %399 = vmatpush1.bf16.msra.mxu0 %v163
    %400 = vmatprep.subr.bf16.mxu0 0
    %401 = vmatpush2.bf16.msra.mxu0 0
    %402 = vmatprep.subr.bf16.mxu0 0
    %403 = vmatpush2.bf16.msra.mxu0 0
    %404 = vmatprep.subr.bf16.mxu0 0
    %405 = vmatpush2.bf16.msra.mxu0 0
    %406 = vmatprep.subr.bf16.mxu0 0
    %407 = vmatpush2.bf16.msra.mxu0 0
    %408 = vmatprep.subr.bf16.mxu0 0
    %409 = vmatpush2.bf16.msra.mxu0 0
    %410 = vmatprep.subr.bf16.mxu0 0
    %411 = vmatpush2.bf16.msra.mxu0 0
    %412 = vmatprep.subr.bf16.mxu0 0
    %413 = vmatpush2.bf16.msra.mxu0 0
    %414 = vmatprep.subr.bf16.mxu0 0
    %415 = vmatpush2.bf16.msra.mxu0 0
    %416 = vmatprep.mubr.bf16.mxu0 0
    %417 = vmatmul.mubr.bf16.gmra.mxu0 %v382
    %v418 = vpop.f32.mrf.mxu0
    %v419 = vadd.f32 0.0, %v418
    %v420 = vpop.f32.mrf.mxu0
    %v421 = vpop.f32.mrf.mxu0
    %v422 = vpop.f32.mrf.mxu0
    %423 = vdwg.mxu0
    %v424 = vadd.f32 %v127, %v419
    %v425 = vmul.f32 %v424, 0.5
    %v426 = vsel %vm154, %v424, %v425
    %v427 = vtanh.pop %v426
    %v428 = vmul.f32 %v427, 0.5
    %v429 = vadd.f32 %v428, 0.5
    %v430 = vsel %vm154, %v427, %v429
    %v431 = vmul.f32 %v430, %v370
    %433 = vrot.lane.b32.xlu0 %v430, 64
    %v434 = vpop.permute.xlu0 %433
    %v436 = vmul.f32 %v430, %v434
    %438 = vrot.lane.b32.xlu0 %v436, 32
    %v439 = vpop.permute.xlu0 %438
    %v441 = vadd.f32 %v431, %v439
    %v442 = vtanh.pop %v441
    %444 = vrot.lane.b32.xlu0 %v442, 64
    %v445 = vpop.permute.xlu0 %444
    %v447 = vmul.f32 %v430, %v445
    %v448 = vpack.c.bf16 %v447, %v447
    %450 = vrot.lane.b32.xlu0 %v448, 32
    %v451 = vpop.permute.xlu0 %450
    %v453 = vsel %vm167, %v451, 0
    %455 = vmatprep.subr.bf16.mxu0 0
    %456 = vmatpush1.bf16.msra.mxu0 0
    %457 = vmatprep.subr.bf16.mxu0 0
    %458 = vmatpush1.bf16.msra.mxu0 0
    %459 = vmatprep.subr.bf16.mxu0 0
    %460 = vmatpush1.bf16.msra.mxu0 0
    %461 = vmatprep.subr.bf16.mxu0 0
    %462 = vmatpush1.bf16.msra.mxu0 0
    %463 = vmatprep.subr.bf16.mxu0 0
    %464 = vmatpush1.bf16.msra.mxu0 0
    %465 = vmatprep.subr.bf16.mxu0 0
    %466 = vmatpush1.bf16.msra.mxu0 0
    %467 = vmatprep.subr.bf16.mxu0 0
    %468 = vmatpush1.bf16.msra.mxu0 %v164
    %469 = vmatprep.subr.bf16.mxu0 0
    %470 = vmatpush1.bf16.msra.mxu0 %v163
    %471 = vmatprep.subr.bf16.mxu0 0
    %472 = vmatpush2.bf16.msra.mxu0 0
    %473 = vmatprep.subr.bf16.mxu0 0
    %474 = vmatpush2.bf16.msra.mxu0 0
    %475 = vmatprep.subr.bf16.mxu0 0
    %476 = vmatpush2.bf16.msra.mxu0 0
    %477 = vmatprep.subr.bf16.mxu0 0
    %478 = vmatpush2.bf16.msra.mxu0 0
    %479 = vmatprep.subr.bf16.mxu0 0
    %480 = vmatpush2.bf16.msra.mxu0 0
    %481 = vmatprep.subr.bf16.mxu0 0
    %482 = vmatpush2.bf16.msra.mxu0 0
    %483 = vmatprep.subr.bf16.mxu0 0
    %484 = vmatpush2.bf16.msra.mxu0 0
    %485 = vmatprep.subr.bf16.mxu0 0
    %486 = vmatpush2.bf16.msra.mxu0 0
    %487 = vmatprep.mubr.bf16.mxu0 0
    %488 = vmatmul.mubr.bf16.gmra.mxu0 %v453
    %v489 = vpop.f32.mrf.mxu0
    %v490 = vadd.f32 0.0, %v489
    %v491 = vpop.f32.mrf.mxu0
    %v492 = vpop.f32.mrf.mxu0
    %v493 = vpop.f32.mrf.mxu0
    %494 = vdwg.mxu0
    %v495 = vadd.f32 %v132, %v490
    %v496 = vmul.f32 %v495, 0.5
    %v497 = vsel %vm154, %v495, %v496
    %v498 = vtanh.pop %v497
    %v499 = vmul.f32 %v498, 0.5
    %v500 = vadd.f32 %v499, 0.5
    %v501 = vsel %vm154, %v498, %v500
    %v502 = vmul.f32 %v501, %v441
    %504 = vrot.lane.b32.xlu0 %v501, 64
    %v505 = vpop.permute.xlu0 %504
    %v507 = vmul.f32 %v501, %v505
    %509 = vrot.lane.b32.xlu0 %v507, 32
    %v510 = vpop.permute.xlu0 %509
    %v512 = vadd.f32 %v502, %v510
    %v513 = vtanh.pop %v512
    %515 = vrot.lane.b32.xlu0 %v513, 64
    %v516 = vpop.permute.xlu0 %515
    %v518 = vmul.f32 %v501, %v516
    %v519 = vpack.c.bf16 %v518, %v518
    %521 = vrot.lane.b32.xlu0 %v519, 32
    %v522 = vpop.permute.xlu0 %521
    %v524 = vsel %vm167, %v522, 0
    %526 = vmatprep.subr.bf16.mxu0 0
    %527 = vmatpush1.bf16.msra.mxu0 0
    %528 = vmatprep.subr.bf16.mxu0 0
    %529 = vmatpush1.bf16.msra.mxu0 0
    %530 = vmatprep.subr.bf16.mxu0 0
    %531 = vmatpush1.bf16.msra.mxu0 0
    %532 = vmatprep.subr.bf16.mxu0 0
    %533 = vmatpush1.bf16.msra.mxu0 0
    %534 = vmatprep.subr.bf16.mxu0 0
    %535 = vmatpush1.bf16.msra.mxu0 0
    %536 = vmatprep.subr.bf16.mxu0 0
    %537 = vmatpush1.bf16.msra.mxu0 0
    %538 = vmatprep.subr.bf16.mxu0 0
    %539 = vmatpush1.bf16.msra.mxu0 %v164
    %540 = vmatprep.subr.bf16.mxu0 0
    %541 = vmatpush1.bf16.msra.mxu0 %v163
    %542 = vmatprep.subr.bf16.mxu0 0
    %543 = vmatpush2.bf16.msra.mxu0 0
    %544 = vmatprep.subr.bf16.mxu0 0
    %545 = vmatpush2.bf16.msra.mxu0 0
    %546 = vmatprep.subr.bf16.mxu0 0
    %547 = vmatpush2.bf16.msra.mxu0 0
    %548 = vmatprep.subr.bf16.mxu0 0
    %549 = vmatpush2.bf16.msra.mxu0 0
    %550 = vmatprep.subr.bf16.mxu0 0
    %551 = vmatpush2.bf16.msra.mxu0 0
    %552 = vmatprep.subr.bf16.mxu0 0
    %553 = vmatpush2.bf16.msra.mxu0 0
    %554 = vmatprep.subr.bf16.mxu0 0
    %555 = vmatpush2.bf16.msra.mxu0 0
    %556 = vmatprep.subr.bf16.mxu0 0
    %557 = vmatpush2.bf16.msra.mxu0 0
    %558 = vmatprep.mubr.bf16.mxu0 0
    %559 = vmatmul.mubr.bf16.gmra.mxu0 %v524
    %v560 = vpop.f32.mrf.mxu0
    %v561 = vadd.f32 0.0, %v560
    %v562 = vpop.f32.mrf.mxu0
    %v563 = vpop.f32.mrf.mxu0
    %v564 = vpop.f32.mrf.mxu0
    %565 = vdwg.mxu0
    %v566 = vadd.f32 %v135, %v561
    %v567 = vmul.f32 %v566, 0.5
    %v568 = vsel %vm154, %v566, %v567
    %v569 = vtanh.pop %v568
    %v570 = vmul.f32 %v569, 0.5
    %v571 = vadd.f32 %v570, 0.5
    %v572 = vsel %vm154, %v569, %v571
    %v573 = vmul.f32 %v572, %v512
    %575 = vrot.lane.b32.xlu0 %v572, 64
    %v576 = vpop.permute.xlu0 %575
    %v578 = vmul.f32 %v572, %v576
    %580 = vrot.lane.b32.xlu0 %v578, 32
    %v581 = vpop.permute.xlu0 %580
    %v583 = vadd.f32 %v573, %v581
    %v584 = vtanh.pop %v583
    %586 = vrot.lane.b32.xlu0 %v584, 64
    %v587 = vpop.permute.xlu0 %586
    %v589 = vmul.f32 %v572, %v587
    %v590 = vpack.c.bf16 %v589, %v589
    %592 = vrot.lane.b32.xlu0 %v590, 32
    %v593 = vpop.permute.xlu0 %592
    %v595 = vsel %vm167, %v593, 0
    %597 = vmatprep.subr.bf16.mxu0 0
    %598 = vmatpush1.bf16.msra.mxu0 0
    %599 = vmatprep.subr.bf16.mxu0 0
    %600 = vmatpush1.bf16.msra.mxu0 0
    %601 = vmatprep.subr.bf16.mxu0 0
    %602 = vmatpush1.bf16.msra.mxu0 0
    %603 = vmatprep.subr.bf16.mxu0 0
    %604 = vmatpush1.bf16.msra.mxu0 0
    %605 = vmatprep.subr.bf16.mxu0 0
    %606 = vmatpush1.bf16.msra.mxu0 0
    %607 = vmatprep.subr.bf16.mxu0 0
    %608 = vmatpush1.bf16.msra.mxu0 0
    %609 = vmatprep.subr.bf16.mxu0 0
    %610 = vmatpush1.bf16.msra.mxu0 %v164
    %611 = vmatprep.subr.bf16.mxu0 0
    %612 = vmatpush1.bf16.msra.mxu0 %v163
    %613 = vmatprep.subr.bf16.mxu0 0
    %614 = vmatpush2.bf16.msra.mxu0 0
    %615 = vmatprep.subr.bf16.mxu0 0
    %616 = vmatpush2.bf16.msra.mxu0 0
    %617 = vmatprep.subr.bf16.mxu0 0
    %618 = vmatpush2.bf16.msra.mxu0 0
    %619 = vmatprep.subr.bf16.mxu0 0
    %620 = vmatpush2.bf16.msra.mxu0 0
    %621 = vmatprep.subr.bf16.mxu0 0
    %622 = vmatpush2.bf16.msra.mxu0 0
    %623 = vmatprep.subr.bf16.mxu0 0
    %624 = vmatpush2.bf16.msra.mxu0 0
    %625 = vmatprep.subr.bf16.mxu0 0
    %626 = vmatpush2.bf16.msra.mxu0 0
    %627 = vmatprep.subr.bf16.mxu0 0
    %628 = vmatpush2.bf16.msra.mxu0 0
    %629 = vmatprep.mubr.bf16.mxu0 0
    %630 = vmatmul.mubr.bf16.gmra.mxu0 %v595
    %v631 = vpop.f32.mrf.mxu0
    %v632 = vadd.f32 0.0, %v631
    %v633 = vpop.f32.mrf.mxu0
    %v634 = vpop.f32.mrf.mxu0
    %v635 = vpop.f32.mrf.mxu0
    %636 = vdwg.mxu0
    %v637 = vadd.f32 %v140, %v632
    %v638 = vmul.f32 %v637, 0.5
    %v639 = vsel %vm154, %v637, %v638
    %v640 = vtanh.pop %v639
    %v641 = vmul.f32 %v640, 0.5
    %v642 = vadd.f32 %v641, 0.5
    %v643 = vsel %vm154, %v640, %v642
    %v644 = vmul.f32 %v643, %v583
    %646 = vrot.lane.b32.xlu0 %v643, 64
    %v647 = vpop.permute.xlu0 %646
    %v649 = vmul.f32 %v643, %v647
    %651 = vrot.lane.b32.xlu0 %v649, 32
    %v652 = vpop.permute.xlu0 %651
    %v654 = vadd.f32 %v644, %v652
    %v655 = vtanh.pop %v654
    %657 = vrot.lane.b32.xlu0 %v655, 64
    %v658 = vpop.permute.xlu0 %657
    %v660 = vmul.f32 %v643, %v658
    %v661 = vpack.c.bf16 %v660, %v660
    %663 = vrot.lane.b32.xlu0 %v661, 32
    %v664 = vpop.permute.xlu0 %663
    %v666 = vsel %vm167, %v664, 0
    %668 = vmatprep.subr.bf16.mxu0 0
    %669 = vmatpush1.bf16.msra.mxu0 0
    %670 = vmatprep.subr.bf16.mxu0 0
    %671 = vmatpush1.bf16.msra.mxu0 0
    %672 = vmatprep.subr.bf16.mxu0 0
    %673 = vmatpush1.bf16.msra.mxu0 0
    %674 = vmatprep.subr.bf16.mxu0 0
    %675 = vmatpush1.bf16.msra.mxu0 0
    %676 = vmatprep.subr.bf16.mxu0 0
    %677 = vmatpush1.bf16.msra.mxu0 0
    %678 = vmatprep.subr.bf16.mxu0 0
    %679 = vmatpush1.bf16.msra.mxu0 0
    %680 = vmatprep.subr.bf16.mxu0 0
    %681 = vmatpush1.bf16.msra.mxu0 %v164
    %682 = vmatprep.subr.bf16.mxu0 0
    %683 = vmatpush1.bf16.msra.mxu0 %v163
    %684 = vmatprep.subr.bf16.mxu0 0
    %685 = vmatpush2.bf16.msra.mxu0 0
    %686 = vmatprep.subr.bf16.mxu0 0
    %687 = vmatpush2.bf16.msra.mxu0 0
    %688 = vmatprep.subr.bf16.mxu0 0
    %689 = vmatpush2.bf16.msra.mxu0 0
    %690 = vmatprep.subr.bf16.mxu0 0
    %691 = vmatpush2.bf16.msra.mxu0 0
    %692 = vmatprep.subr.bf16.mxu0 0
    %693 = vmatpush2.bf16.msra.mxu0 0
    %694 = vmatprep.subr.bf16.mxu0 0
    %695 = vmatpush2.bf16.msra.mxu0 0
    %696 = vmatprep.subr.bf16.mxu0 0
    %697 = vmatpush2.bf16.msra.mxu0 0
    %698 = vmatprep.subr.bf16.mxu0 0
    %699 = vmatpush2.bf16.msra.mxu0 0
    %700 = vmatprep.mubr.bf16.mxu0 0
    %701 = vmatmul.mubr.bf16.gmra.mxu0 %v666
    %v702 = vpop.f32.mrf.mxu0
    %v703 = vadd.f32 0.0, %v702
    %v704 = vpop.f32.mrf.mxu0
    %v705 = vpop.f32.mrf.mxu0
    %v706 = vpop.f32.mrf.mxu0
    %707 = vdwg.mxu0
    %v708 = vadd.f32 %v143, %v703
    %v709 = vmul.f32 %v708, 0.5
    %v710 = vsel %vm154, %v708, %v709
    %v711 = vtanh.pop %v710
    %v712 = vmul.f32 %v711, 0.5
    %v713 = vadd.f32 %v712, 0.5
    %v714 = vsel %vm154, %v711, %v713
    %v715 = vmul.f32 %v714, %v654
    %717 = vrot.lane.b32.xlu0 %v714, 64
    %v718 = vpop.permute.xlu0 %717
    %v720 = vmul.f32 %v714, %v718
    %722 = vrot.lane.b32.xlu0 %v720, 32
    %v723 = vpop.permute.xlu0 %722
    %v725 = vadd.f32 %v715, %v723
    %v726 = vtanh.pop %v725
    %728 = vrot.lane.b32.xlu0 %v726, 64
    %v729 = vpop.permute.xlu0 %728
    %v731 = vmul.f32 %v714, %v729
    %v732 = vpack.c.bf16 %v731, %v731
    %v733 = vld [vmem:[%s4] sm:$0xf]
    %v734 = vld [vmem:[%s4 + $0x4] sm:$0xf]
    %v735 = vld [vmem:[%s4 + $0x8] sm:$0xf]
    %v736 = vld [vmem:[%s4 + $0xc] sm:$0xf]
    %v737 = vld [vmem:[%s5] sm:$0x1]
    %v739 = vlaneseq
    %v740 = vshrl.u32 %v739, 7
    %v741 = vsub.s32 0, %v740
    %v742 = vrot.slane %v737, %v741
    %745 = vrot.lane.b32.xlu0 %v732, 32
    %v746 = vpop.permute.xlu0 %745
    %v751 = vunpack.c.l.b16 %v733
    %v752 = vunpack.c.l.b16 %v734
    %v753 = vunpack.c.l.b16 %v735
    %v754 = vunpack.c.l.b16 %v736
    %v755 = vpack.c.b16 %v752, %v751
    %v756 = vpack.c.b16 %v754, %v753
    %v760 = vsel %vm167, %v746, 0
    %762 = vmatprep.subr.bf16.mxu0 0
    %763 = vmatpush1.bf16.msra.mxu0 0
    %764 = vmatprep.subr.bf16.mxu0 0
    %765 = vmatpush1.bf16.msra.mxu0 0
    %766 = vmatprep.subr.bf16.mxu0 0
    %767 = vmatpush1.bf16.msra.mxu0 0
    %768 = vmatprep.subr.bf16.mxu0 0
    %769 = vmatpush1.bf16.msra.mxu0 0
    %770 = vmatprep.subr.bf16.mxu0 0
    %771 = vmatpush1.bf16.msra.mxu0 0
    %772 = vmatprep.subr.bf16.mxu0 0
    %773 = vmatpush1.bf16.msra.mxu0 0
    %774 = vmatprep.subr.bf16.mxu0 0
    %775 = vmatpush1.bf16.msra.mxu0 %v756
    %776 = vmatprep.subr.bf16.mxu0 0
    %777 = vmatpush1.bf16.msra.mxu0 %v755
    %778 = vmatprep.subr.bf16.mxu0 0
    %779 = vmatpush2.bf16.msra.mxu0 0
    %780 = vmatprep.subr.bf16.mxu0 0
    %781 = vmatpush2.bf16.msra.mxu0 0
    %782 = vmatprep.subr.bf16.mxu0 0
    %783 = vmatpush2.bf16.msra.mxu0 0
    %784 = vmatprep.subr.bf16.mxu0 0
    %785 = vmatpush2.bf16.msra.mxu0 0
    %786 = vmatprep.subr.bf16.mxu0 0
    %787 = vmatpush2.bf16.msra.mxu0 0
    %788 = vmatprep.subr.bf16.mxu0 0
    %789 = vmatpush2.bf16.msra.mxu0 0
    %790 = vmatprep.subr.bf16.mxu0 0
    %791 = vmatpush2.bf16.msra.mxu0 0
    %792 = vmatprep.subr.bf16.mxu0 0
    %793 = vmatpush2.bf16.msra.mxu0 0
    %794 = vmatprep.mubr.bf16.mxu0 0
    %795 = vmatmul.mubr.bf16.gmra.mxu0 %v760
    %v796 = vpop.f32.mrf.mxu0
    %v797 = vadd.f32 %v742, %v796
    %v798 = vpop.f32.mrf.mxu0
    %v799 = vpop.f32.mrf.mxu0
    %v800 = vpop.f32.mrf.mxu0
    %801 = vdwg.mxu0
    %vm802 = vcmask 58368
    %803 = vst.msk [vmem:[#allocation2] sm:$0x3] %vm802, %v797
    // Predicated region
    $region26: #{tpu_custom_call.1} parent=1 // pred_check
      _
    $region27: #{tpu_custom_call.1} parent=1 // pred_check_branch
      %805 = sbr.rel (0) target = $region29
    $region28: #{tpu_custom_call.1} parent=1 // pred_region
      %s807 = ssub.s32 32, 32
      %808 = vsyncadd [#allocation3], %s807
      %s810 = sshll.u32 [#allocation2], 4
      %s811 = int_to_ptr.vmem [resolvable:$true] %s810
      %813 = dma.vmem_to_hbm [thread:$0]  %s811, 32, %s6, [#allocation3]
    $region29: #{tpu_custom_call.1} parent=1 // pred_fallthru
      _
    // Predicated region
    $region30: #{tpu_custom_call.1} parent=1 // pred_check
      _
    $region31: #{tpu_custom_call.1} parent=1 // pred_check_branch
      %815 = sbr.rel (0) target = $region33
    $region32: #{tpu_custom_call.1} parent=1 // pred_region
      %816 = dma.done [#allocation3], 32
    $region33: #{tpu_custom_call.1} parent=1 // pred_fallthru
      _
    %817 = vsyncpa [#allocation3], 1

</llo_original>
